<compile_context>
chip_gen: v5e
topology: v5e:2x2
jax: 0.10.0
libtpu: 0.0.40
codegen_flags: <defaults>
</compile_context>

<pallas_src>
import functools

import jax
import jax.numpy as jnp
from jax.experimental import pallas as pl
from jax.experimental.pallas import tpu as pltpu


def _bid_rnn_kernel(T, B, x_ref, waa_ref, wax_ref, wya_ref, baa_ref, bax_ref,
                    bya_ref, out_ref, aall_ref):
    """Single-invocation kernel (no grid): the whole problem fits in VMEM/vregs.

    x_ref   : (B, T, I) f32  -- native layout, no wrapper-side transpose.
    out_ref : (T*B, O)  f32  -- row r = i*B + b, i = backward-sweep step index
                                (matches torch.cat(dim=0) before the final reshape).
    aall_ref: (T*B, H)  f32 VMEM scratch -- backward-sweep hidden states, projected
                                with one epilogue matmul.
    """
    H = waa_ref.shape[0]
    I = wax_ref.shape[0]

    # ------------------------- prologue (off the serial chain) -----------------
    # Fold the two recurrent biases once (previously done in the wrapper).
    b_rec = baa_ref[...] + bax_ref[...]                         # (1, H) f32

    # Hoisted input projection: ONE (B*T, I) @ (I, H) MXU matmul, bf16 operands,
    # f32 accumulation.  Row r = b*T + t (native x layout, pure retiling reshape).
    x_bt = x_ref[...].reshape(B * T, I)
    xw = jnp.dot(x_bt.astype(jnp.bfloat16),
                 wax_ref[...].astype(jnp.bfloat16),
                 preferred_element_type=jnp.float32) + b_rec    # (B*T, H) f32

    # Keep the projected input entirely in vregs: one (B, H) value per time step,
    # obtained with static slices (each step's data sits in its own vreg tile, so no
    # sublane-offset shuffles land on the recurrence's critical path).
    xw3 = xw.reshape(B, T, H)
    xp = [xw3[:, t, :] for t in range(T)]                       # T x (B, H) f32

    # Recurrent weight resident in vregs for the whole recurrence (bf16 operand).
    # TODO(synk): see header -- explicit pltpu.matmul_push_rhs staging not adopted.
    waa_bf = waa_ref[...].astype(jnp.bfloat16)                  # (H, H) bf16

    def step(a, t):
        # Serial critical path per step: f32->bf16 cast, one MXU matmul (f32 acc),
        # one VPU add (f32), one EUP tanh (f32).  xp[t] is precomputed/off-chain.
        pre = jnp.dot(a.astype(jnp.bfloat16), waa_bf,
                      preferred_element_type=jnp.float32)
        return jnp.tanh(pre + xp[t])

    # ---- first sweep: forward in time, outputs dropped (state evolves) --------
    a = jnp.zeros((B, H), dtype=jnp.float32)
    for t in range(T):                      # static trip count -> fully unrolled
        a = step(a, t)

    # ---- second sweep: reverse time; stash hidden states (off-chain stores) ---
    for i in range(T):
        a = step(a, T - 1 - i)
        aall_ref[pl.ds(i * B, B), :] = a    # 2-row masked store, not on dep chain

    # ------------------------- epilogue -----------------------------------------
    # Single batched output projection + single store (instead of T tiny matmuls
    # and T partial stores).
    y = jnp.dot(aall_ref[...].astype(jnp.bfloat16),
                wya_ref[...].astype(jnp.bfloat16),
                preferred_element_type=jnp.float32) + bya_ref[...]
    out_ref[...] = jnp.tanh(y).astype(out_ref.dtype)


@jax.jit
def many_to_many_bid_rnn(x, params):
    """x: (B, T, I) float32. Returns (B, T, O) float32 (same as the torch module)."""
    waa_t, wax_t, wya_t, baa, bax, bya = params
    B, T, I = x.shape
    H = waa_t.shape[0]
    O = wya_t.shape[1]

    vmem = pl.BlockSpec(memory_space=pltpu.MemorySpace.VMEM)

    flops = (2 * T * B * I * H            # input projection
             + 2 * (2 * T) * B * H * H    # 2T recurrent matmuls
             + 2 * T * B * H * O)         # output projection
    transcendentals = 2 * T * B * H + T * B * O
    bytes_accessed = 4 * (B * T * I + H * H + I * H + H * O + 2 * H + O + T * B * O)

    out_flat = pl.pallas_call(
        functools.partial(_bid_rnn_kernel, T, B),
        out_shape=jax.ShapeDtypeStruct((T * B, O), jnp.float32),
        in_specs=[vmem] * 7,
        out_specs=vmem,
        scratch_shapes=[
            pltpu.VMEM((T * B, H), jnp.float32),   # backward-sweep hidden states
        ],
        cost_estimate=pl.CostEstimate(flops=flops,
                                      transcendentals=transcendentals,
                                      bytes_accessed=bytes_accessed),
    )(x, waa_t, wax_t, wya_t, baa, bax, bya)

    # torch.cat((...), 0) gives (T*B, O); torch.reshape -> (B, T, O).  This is a pure
    # row-major reshape (no transpose) -- free under XLA.
    return out_flat.reshape(B, T, O)


def reference(x, params):
    """Pure-JAX (f32) replica of the PyTorch forward (bias=False, tanh/tanh)."""
    waa_t, wax_t, wya_t, baa, bax, bya = params
    B, T, _ = x.shape
    H = waa_t.shape[0]
    a = jnp.zeros((1, H), jnp.float32)          # self.a starts as (1, H) zeros
    for t in range(T):
        a = jnp.tanh(a @ waa_t + baa + x[:, t, :] @ wax_t + bax)
    rows = []
    for i in range(T):
        t = T - 1 - i
        a = jnp.tanh(a @ waa_t + baa + x[:, t, :] @ wax_t + bax)
        rows.append(jnp.tanh(a @ wya_t + bya))
    result = jnp.concatenate(rows, axis=0)       # (T*B, O)
    return result.reshape(B, T, -1)


def init_params(key, input_size, hidden_size, output_size):
    """Deterministic init mimicking nn.Linear default (uniform +-1/sqrt(fan_in))."""
    ks = jax.random.split(key, 6)

    def u(k, shape, fan_in):
        bound = 1.0 / jnp.sqrt(jnp.float32(fan_in))
        return jax.random.uniform(k, shape, jnp.float32, -bound, bound)

    waa_t = u(ks[0], (hidden_size, hidden_size), hidden_size)   # (in=H, out=H)
    wax_t = u(ks[1], (input_size, hidden_size), input_size)     # (in=I, out=H)
    wya_t = u(ks[2], (hidden_size, output_size), hidden_size)   # (in=H, out=O)
    baa = u(ks[3], (1, hidden_size), hidden_size)
    bax = u(ks[4], (1, hidden_size), input_size)
    bya = u(ks[5], (1, output_size), hidden_size)
    return (waa_t, wax_t, wya_t, baa, bax, bya)


if __name__ == "__main__":
    B, T, I, H, O = 2, 8, 4, 32, 8   # input_times = output_times = T

    key = jax.random.PRNGKey(0)
    k_x, k_p = jax.random.split(key)
    x = jax.random.normal(k_x, (B, T, I), dtype=jnp.float32)
    params = init_params(k_p, I, H, O)

    out = jax.block_until_ready(many_to_many_bid_rnn(x, params))
    ref = jax.block_until_ready(reference(x, params))

    assert out.shape == (B, T, O)
    # bf16 MXU operands (per perf review) => relax the 1e-5 check to ~1e-2 scale.
    assert jnp.allclose(out, ref, atol=3e-2, rtol=1e-2), \
        "mismatch vs. pure-JAX reference"

    print("KERNEL_OK")
</pallas_src>

<mosaic_0001>
module attributes {stable_mosaic.version = 11 : i64} {
  func.func @_bid_rnn_kernel(%arg0: memref<2x8x4xf32, #tpu.memory_space<vmem>>, %arg1: memref<32x32xf32, #tpu.memory_space<vmem>>, %arg2: memref<4x32xf32, #tpu.memory_space<vmem>>, %arg3: memref<32x8xf32, #tpu.memory_space<vmem>>, %arg4: memref<1x32xf32, #tpu.memory_space<vmem>>, %arg5: memref<1x32xf32, #tpu.memory_space<vmem>>, %arg6: memref<1x8xf32, #tpu.memory_space<vmem>>, %arg7: memref<16x8xf32, #tpu.memory_space<vmem>>, %arg8: memref<16x32xf32, #tpu.memory_space<vmem>>) attributes {dimension_semantics = [], scalar_prefetch = 0 : i64, scratch_operands = 1 : i64, tpu.core_type = #tpu.core_type<tc>} {
    %c0 = arith.constant 0 : index
    %c0_0 = arith.constant 0 : index
    %0 = vector.load %arg4[%c0, %c0_0] : memref<1x32xf32, #tpu.memory_space<vmem>>, vector<1x32xf32>
    %c0_1 = arith.constant 0 : index
    %c0_2 = arith.constant 0 : index
    %1 = vector.load %arg5[%c0_1, %c0_2] : memref<1x32xf32, #tpu.memory_space<vmem>>, vector<1x32xf32>
    %2 = arith.addf %0, %1 : vector<1x32xf32>
    %c0_3 = arith.constant 0 : index
    %c0_4 = arith.constant 0 : index
    %c0_5 = arith.constant 0 : index
    %3 = vector.load %arg0[%c0_3, %c0_4, %c0_5] : memref<2x8x4xf32, #tpu.memory_space<vmem>>, vector<2x8x4xf32>
    %4 = vector.shape_cast %3 : vector<2x8x4xf32> to vector<16x4xf32>
    %5 = arith.truncf %4 : vector<16x4xf32> to vector<16x4xbf16>
    %c0_6 = arith.constant 0 : index
    %c0_7 = arith.constant 0 : index
    %6 = vector.load %arg2[%c0_6, %c0_7] : memref<4x32xf32, #tpu.memory_space<vmem>>, vector<4x32xf32>
    %7 = arith.truncf %6 : vector<4x32xf32> to vector<4x32xbf16>
    %cst = arith.constant dense<0.000000e+00> : vector<16x32xf32>
    %8 = tpu.matmul %5, %7, %cst {dimension_numbers = #tpu.dot_dimension_numbers<[1], [0], [0], [1], [0, 0, 1, 1], [], []>} : vector<16x4xbf16>, vector<4x32xbf16>, vector<16x32xf32> -> vector<16x32xf32>
    %9 = vector.broadcast %2 : vector<1x32xf32> to vector<16x32xf32>
    %10 = arith.addf %8, %9 : vector<16x32xf32>
    %11 = vector.shape_cast %10 : vector<16x32xf32> to vector<2x8x32xf32>
    %12 = vector.extract_strided_slice %11 {offsets = [0, 0, 0], sizes = [2, 1, 32], strides = [1, 1, 1]} : vector<2x8x32xf32> to vector<2x1x32xf32>
    %13 = vector.shape_cast %12 : vector<2x1x32xf32> to vector<2x32xf32>
    %14 = vector.extract_strided_slice %11 {offsets = [0, 1, 0], sizes = [2, 1, 32], strides = [1, 1, 1]} : vector<2x8x32xf32> to vector<2x1x32xf32>
    %15 = vector.shape_cast %14 : vector<2x1x32xf32> to vector<2x32xf32>
    %16 = vector.extract_strided_slice %11 {offsets = [0, 2, 0], sizes = [2, 1, 32], strides = [1, 1, 1]} : vector<2x8x32xf32> to vector<2x1x32xf32>
    %17 = vector.shape_cast %16 : vector<2x1x32xf32> to vector<2x32xf32>
    %18 = vector.extract_strided_slice %11 {offsets = [0, 3, 0], sizes = [2, 1, 32], strides = [1, 1, 1]} : vector<2x8x32xf32> to vector<2x1x32xf32>
    %19 = vector.shape_cast %18 : vector<2x1x32xf32> to vector<2x32xf32>
    %20 = vector.extract_strided_slice %11 {offsets = [0, 4, 0], sizes = [2, 1, 32], strides = [1, 1, 1]} : vector<2x8x32xf32> to vector<2x1x32xf32>
    %21 = vector.shape_cast %20 : vector<2x1x32xf32> to vector<2x32xf32>
    %22 = vector.extract_strided_slice %11 {offsets = [0, 5, 0], sizes = [2, 1, 32], strides = [1, 1, 1]} : vector<2x8x32xf32> to vector<2x1x32xf32>
    %23 = vector.shape_cast %22 : vector<2x1x32xf32> to vector<2x32xf32>
    %24 = vector.extract_strided_slice %11 {offsets = [0, 6, 0], sizes = [2, 1, 32], strides = [1, 1, 1]} : vector<2x8x32xf32> to vector<2x1x32xf32>
    %25 = vector.shape_cast %24 : vector<2x1x32xf32> to vector<2x32xf32>
    %26 = vector.extract_strided_slice %11 {offsets = [0, 7, 0], sizes = [2, 1, 32], strides = [1, 1, 1]} : vector<2x8x32xf32> to vector<2x1x32xf32>
    %27 = vector.shape_cast %26 : vector<2x1x32xf32> to vector<2x32xf32>
    %c0_8 = arith.constant 0 : index
    %c0_9 = arith.constant 0 : index
    %28 = vector.load %arg1[%c0_8, %c0_9] : memref<32x32xf32, #tpu.memory_space<vmem>>, vector<32x32xf32>
    %29 = arith.truncf %28 : vector<32x32xf32> to vector<32x32xbf16>
    %cst_10 = arith.constant 0.000000e+00 : f32
    %30 = vector.broadcast %cst_10 : f32 to vector<2x32xf32>
    %31 = arith.truncf %30 : vector<2x32xf32> to vector<2x32xbf16>
    %cst_11 = arith.constant dense<0.000000e+00> : vector<2x32xf32>
    %32 = tpu.matmul %31, %29, %cst_11 {dimension_numbers = #tpu.dot_dimension_numbers<[1], [0], [0], [1], [0, 0, 1, 1], [], []>} : vector<2x32xbf16>, vector<32x32xbf16>, vector<2x32xf32> -> vector<2x32xf32>
    %33 = arith.addf %32, %13 : vector<2x32xf32>
    %34 = math.tanh %33 : vector<2x32xf32>
    %35 = arith.truncf %34 : vector<2x32xf32> to vector<2x32xbf16>
    %cst_12 = arith.constant dense<0.000000e+00> : vector<2x32xf32>
    %36 = tpu.matmul %35, %29, %cst_12 {dimension_numbers = #tpu.dot_dimension_numbers<[1], [0], [0], [1], [0, 0, 1, 1], [], []>} : vector<2x32xbf16>, vector<32x32xbf16>, vector<2x32xf32> -> vector<2x32xf32>
    %37 = arith.addf %36, %15 : vector<2x32xf32>
    %38 = math.tanh %37 : vector<2x32xf32>
    %39 = arith.truncf %38 : vector<2x32xf32> to vector<2x32xbf16>
    %cst_13 = arith.constant dense<0.000000e+00> : vector<2x32xf32>
    %40 = tpu.matmul %39, %29, %cst_13 {dimension_numbers = #tpu.dot_dimension_numbers<[1], [0], [0], [1], [0, 0, 1, 1], [], []>} : vector<2x32xbf16>, vector<32x32xbf16>, vector<2x32xf32> -> vector<2x32xf32>
    %41 = arith.addf %40, %17 : vector<2x32xf32>
    %42 = math.tanh %41 : vector<2x32xf32>
    %43 = arith.truncf %42 : vector<2x32xf32> to vector<2x32xbf16>
    %cst_14 = arith.constant dense<0.000000e+00> : vector<2x32xf32>
    %44 = tpu.matmul %43, %29, %cst_14 {dimension_numbers = #tpu.dot_dimension_numbers<[1], [0], [0], [1], [0, 0, 1, 1], [], []>} : vector<2x32xbf16>, vector<32x32xbf16>, vector<2x32xf32> -> vector<2x32xf32>
    %45 = arith.addf %44, %19 : vector<2x32xf32>
    %46 = math.tanh %45 : vector<2x32xf32>
    %47 = arith.truncf %46 : vector<2x32xf32> to vector<2x32xbf16>
    %cst_15 = arith.constant dense<0.000000e+00> : vector<2x32xf32>
    %48 = tpu.matmul %47, %29, %cst_15 {dimension_numbers = #tpu.dot_dimension_numbers<[1], [0], [0], [1], [0, 0, 1, 1], [], []>} : vector<2x32xbf16>, vector<32x32xbf16>, vector<2x32xf32> -> vector<2x32xf32>
    %49 = arith.addf %48, %21 : vector<2x32xf32>
    %50 = math.tanh %49 : vector<2x32xf32>
    %51 = arith.truncf %50 : vector<2x32xf32> to vector<2x32xbf16>
    %cst_16 = arith.constant dense<0.000000e+00> : vector<2x32xf32>
    %52 = tpu.matmul %51, %29, %cst_16 {dimension_numbers = #tpu.dot_dimension_numbers<[1], [0], [0], [1], [0, 0, 1, 1], [], []>} : vector<2x32xbf16>, vector<32x32xbf16>, vector<2x32xf32> -> vector<2x32xf32>
    %53 = arith.addf %52, %23 : vector<2x32xf32>
    %54 = math.tanh %53 : vector<2x32xf32>
    %55 = arith.truncf %54 : vector<2x32xf32> to vector<2x32xbf16>
    %cst_17 = arith.constant dense<0.000000e+00> : vector<2x32xf32>
    %56 = tpu.matmul %55, %29, %cst_17 {dimension_numbers = #tpu.dot_dimension_numbers<[1], [0], [0], [1], [0, 0, 1, 1], [], []>} : vector<2x32xbf16>, vector<32x32xbf16>, vector<2x32xf32> -> vector<2x32xf32>
    %57 = arith.addf %56, %25 : vector<2x32xf32>
    %58 = math.tanh %57 : vector<2x32xf32>
    %59 = arith.truncf %58 : vector<2x32xf32> to vector<2x32xbf16>
    %cst_18 = arith.constant dense<0.000000e+00> : vector<2x32xf32>
    %60 = tpu.matmul %59, %29, %cst_18 {dimension_numbers = #tpu.dot_dimension_numbers<[1], [0], [0], [1], [0, 0, 1, 1], [], []>} : vector<2x32xbf16>, vector<32x32xbf16>, vector<2x32xf32> -> vector<2x32xf32>
    %61 = arith.addf %60, %27 : vector<2x32xf32>
    %62 = math.tanh %61 : vector<2x32xf32>
    %63 = arith.truncf %62 : vector<2x32xf32> to vector<2x32xbf16>
    %cst_19 = arith.constant dense<0.000000e+00> : vector<2x32xf32>
    %64 = tpu.matmul %63, %29, %cst_19 {dimension_numbers = #tpu.dot_dimension_numbers<[1], [0], [0], [1], [0, 0, 1, 1], [], []>} : vector<2x32xbf16>, vector<32x32xbf16>, vector<2x32xf32> -> vector<2x32xf32>
    %65 = arith.addf %64, %27 : vector<2x32xf32>
    %66 = math.tanh %65 : vector<2x32xf32>
    %c0_20 = arith.constant 0 : index
    %c0_21 = arith.constant 0 : index
    %67 = vector.load %arg8[%c0_20, %c0_21] : memref<16x32xf32, #tpu.memory_space<vmem>>, vector<2x32xf32>
    tpu.vector_store %arg8[%c0_20, %c0_21], %66 {strides = array<i32>} : memref<16x32xf32, #tpu.memory_space<vmem>>, vector<2x32xf32>,
    %68 = arith.truncf %66 : vector<2x32xf32> to vector<2x32xbf16>
    %cst_22 = arith.constant dense<0.000000e+00> : vector<2x32xf32>
    %69 = tpu.matmul %68, %29, %cst_22 {dimension_numbers = #tpu.dot_dimension_numbers<[1], [0], [0], [1], [0, 0, 1, 1], [], []>} : vector<2x32xbf16>, vector<32x32xbf16>, vector<2x32xf32> -> vector<2x32xf32>
    %70 = arith.addf %69, %25 : vector<2x32xf32>
    %71 = math.tanh %70 : vector<2x32xf32>
    %c2 = arith.constant 2 : index
    %c0_23 = arith.constant 0 : index
    %72 = vector.load %arg8[%c2, %c0_23] : memref<16x32xf32, #tpu.memory_space<vmem>>, vector<2x32xf32>
    tpu.vector_store %arg8[%c2, %c0_23], %71 {strides = array<i32>} : memref<16x32xf32, #tpu.memory_space<vmem>>, vector<2x32xf32>,
    %73 = arith.truncf %71 : vector<2x32xf32> to vector<2x32xbf16>
    %cst_24 = arith.constant dense<0.000000e+00> : vector<2x32xf32>
    %74 = tpu.matmul %73, %29, %cst_24 {dimension_numbers = #tpu.dot_dimension_numbers<[1], [0], [0], [1], [0, 0, 1, 1], [], []>} : vector<2x32xbf16>, vector<32x32xbf16>, vector<2x32xf32> -> vector<2x32xf32>
    %75 = arith.addf %74, %23 : vector<2x32xf32>
    %76 = math.tanh %75 : vector<2x32xf32>
    %c4 = arith.constant 4 : index
    %c0_25 = arith.constant 0 : index
    %77 = vector.load %arg8[%c4, %c0_25] : memref<16x32xf32, #tpu.memory_space<vmem>>, vector<2x32xf32>
    tpu.vector_store %arg8[%c4, %c0_25], %76 {strides = array<i32>} : memref<16x32xf32, #tpu.memory_space<vmem>>, vector<2x32xf32>,
    %78 = arith.truncf %76 : vector<2x32xf32> to vector<2x32xbf16>
    %cst_26 = arith.constant dense<0.000000e+00> : vector<2x32xf32>
    %79 = tpu.matmul %78, %29, %cst_26 {dimension_numbers = #tpu.dot_dimension_numbers<[1], [0], [0], [1], [0, 0, 1, 1], [], []>} : vector<2x32xbf16>, vector<32x32xbf16>, vector<2x32xf32> -> vector<2x32xf32>
    %80 = arith.addf %79, %21 : vector<2x32xf32>
    %81 = math.tanh %80 : vector<2x32xf32>
    %c6 = arith.constant 6 : index
    %c0_27 = arith.constant 0 : index
    %82 = vector.load %arg8[%c6, %c0_27] : memref<16x32xf32, #tpu.memory_space<vmem>>, vector<2x32xf32>
    tpu.vector_store %arg8[%c6, %c0_27], %81 {strides = array<i32>} : memref<16x32xf32, #tpu.memory_space<vmem>>, vector<2x32xf32>,
    %83 = arith.truncf %81 : vector<2x32xf32> to vector<2x32xbf16>
    %cst_28 = arith.constant dense<0.000000e+00> : vector<2x32xf32>
    %84 = tpu.matmul %83, %29, %cst_28 {dimension_numbers = #tpu.dot_dimension_numbers<[1], [0], [0], [1], [0, 0, 1, 1], [], []>} : vector<2x32xbf16>, vector<32x32xbf16>, vector<2x32xf32> -> vector<2x32xf32>
    %85 = arith.addf %84, %19 : vector<2x32xf32>
    %86 = math.tanh %85 : vector<2x32xf32>
    %c8 = arith.constant 8 : index
    %c0_29 = arith.constant 0 : index
    %87 = vector.load %arg8[%c8, %c0_29] : memref<16x32xf32, #tpu.memory_space<vmem>>, vector<2x32xf32>
    tpu.vector_store %arg8[%c8, %c0_29], %86 {strides = array<i32>} : memref<16x32xf32, #tpu.memory_space<vmem>>, vector<2x32xf32>,
    %88 = arith.truncf %86 : vector<2x32xf32> to vector<2x32xbf16>
    %cst_30 = arith.constant dense<0.000000e+00> : vector<2x32xf32>
    %89 = tpu.matmul %88, %29, %cst_30 {dimension_numbers = #tpu.dot_dimension_numbers<[1], [0], [0], [1], [0, 0, 1, 1], [], []>} : vector<2x32xbf16>, vector<32x32xbf16>, vector<2x32xf32> -> vector<2x32xf32>
    %90 = arith.addf %89, %17 : vector<2x32xf32>
    %91 = math.tanh %90 : vector<2x32xf32>
    %c10 = arith.constant 10 : index
    %c0_31 = arith.constant 0 : index
    %92 = vector.load %arg8[%c10, %c0_31] : memref<16x32xf32, #tpu.memory_space<vmem>>, vector<2x32xf32>
    tpu.vector_store %arg8[%c10, %c0_31], %91 {strides = array<i32>} : memref<16x32xf32, #tpu.memory_space<vmem>>, vector<2x32xf32>,
    %93 = arith.truncf %91 : vector<2x32xf32> to vector<2x32xbf16>
    %cst_32 = arith.constant dense<0.000000e+00> : vector<2x32xf32>
    %94 = tpu.matmul %93, %29, %cst_32 {dimension_numbers = #tpu.dot_dimension_numbers<[1], [0], [0], [1], [0, 0, 1, 1], [], []>} : vector<2x32xbf16>, vector<32x32xbf16>, vector<2x32xf32> -> vector<2x32xf32>
    %95 = arith.addf %94, %15 : vector<2x32xf32>
    %96 = math.tanh %95 : vector<2x32xf32>
    %c12 = arith.constant 12 : index
    %c0_33 = arith.constant 0 : index
    %97 = vector.load %arg8[%c12, %c0_33] : memref<16x32xf32, #tpu.memory_space<vmem>>, vector<2x32xf32>
    tpu.vector_store %arg8[%c12, %c0_33], %96 {strides = array<i32>} : memref<16x32xf32, #tpu.memory_space<vmem>>, vector<2x32xf32>,
    %98 = arith.truncf %96 : vector<2x32xf32> to vector<2x32xbf16>
    %cst_34 = arith.constant dense<0.000000e+00> : vector<2x32xf32>
    %99 = tpu.matmul %98, %29, %cst_34 {dimension_numbers = #tpu.dot_dimension_numbers<[1], [0], [0], [1], [0, 0, 1, 1], [], []>} : vector<2x32xbf16>, vector<32x32xbf16>, vector<2x32xf32> -> vector<2x32xf32>
    %100 = arith.addf %99, %13 : vector<2x32xf32>
    %101 = math.tanh %100 : vector<2x32xf32>
    %c14 = arith.constant 14 : index
    %c0_35 = arith.constant 0 : index
    %102 = vector.load %arg8[%c14, %c0_35] : memref<16x32xf32, #tpu.memory_space<vmem>>, vector<2x32xf32>
    tpu.vector_store %arg8[%c14, %c0_35], %101 {strides = array<i32>} : memref<16x32xf32, #tpu.memory_space<vmem>>, vector<2x32xf32>,
    %c0_36 = arith.constant 0 : index
    %c0_37 = arith.constant 0 : index
    %103 = vector.load %arg8[%c0_36, %c0_37] : memref<16x32xf32, #tpu.memory_space<vmem>>, vector<16x32xf32>
    %104 = arith.truncf %103 : vector<16x32xf32> to vector<16x32xbf16>
    %c0_38 = arith.constant 0 : index
    %c0_39 = arith.constant 0 : index
    %105 = vector.load %arg3[%c0_38, %c0_39] : memref<32x8xf32, #tpu.memory_space<vmem>>, vector<32x8xf32>
    %106 = arith.truncf %105 : vector<32x8xf32> to vector<32x8xbf16>
    %cst_40 = arith.constant dense<0.000000e+00> : vector<16x8xf32>
    %107 = tpu.matmul %104, %106, %cst_40 {dimension_numbers = #tpu.dot_dimension_numbers<[1], [0], [0], [1], [0, 0, 1, 1], [], []>} : vector<16x32xbf16>, vector<32x8xbf16>, vector<16x8xf32> -> vector<16x8xf32>
    %c0_41 = arith.constant 0 : index
    %c0_42 = arith.constant 0 : index
    %108 = vector.load %arg6[%c0_41, %c0_42] : memref<1x8xf32, #tpu.memory_space<vmem>>, vector<1x8xf32>
    %109 = vector.broadcast %108 : vector<1x8xf32> to vector<16x8xf32>
    %110 = arith.addf %107, %109 : vector<16x8xf32>
    %111 = math.tanh %110 : vector<16x8xf32>
    %c0_43 = arith.constant 0 : index
    %c0_44 = arith.constant 0 : index
    %112 = vector.load %arg7[%c0_43, %c0_44] : memref<16x8xf32, #tpu.memory_space<vmem>>, vector<16x8xf32>
    tpu.vector_store %arg7[%c0_43, %c0_44], %111 {strides = array<i32>} : memref<16x8xf32, #tpu.memory_space<vmem>>, vector<16x8xf32>,
    return
  }
}

</mosaic_0001>

<llo_original>
// kernel: many_to_many_bid_rnn.1
$region0: #{many_to_many_bid_rnn.1}
  #allocation0 [shape = 'u32[]', space=smem, size = 0x4, offset = 0x4, fixed_abs, tag = 'smem constant byte address 0x4 - core index']
  #allocation1 [shape = 'u32[72,128]{1,0:T(1,128)}', space=vmem, size = 0x9000, scoped, tag = 'internal scratch']
  #allocation2 [shape = 'f32[16,32]{1,0:T(8,128)}', space=vmem, size = 0x2000, scoped, tag = 'scratch operand']
  %s0 = inlined_call_operand.vmem [shape: f32[2,8,4], index: 0, kind: input, shape index: {}]
  %s1 = inlined_call_operand.vmem [shape: f32[32,32], index: 1, kind: input, shape index: {}]
  %s2 = inlined_call_operand.vmem [shape: f32[4,32], index: 2, kind: input, shape index: {}]
  %s3 = inlined_call_operand.vmem [shape: f32[32,8], index: 3, kind: input, shape index: {}]
  %s4 = inlined_call_operand.vmem [shape: f32[1,32], index: 4, kind: input, shape index: {}]
  %s5 = inlined_call_operand.vmem [shape: f32[1,32], index: 5, kind: input, shape index: {}]
  %s6 = inlined_call_operand.vmem [shape: f32[1,8], index: 6, kind: input, shape index: {}]
  %s7 = inlined_call_operand.hbm [shape: f32[16,8], index: 7, kind: output, shape index: {}]
  %s8 = sld [smem:[#allocation0]]
  $region38: #{many_to_many_bid_rnn.1} parent=0
    _
  %s10 = ssub.s32 1, %s8
  %s11 = scalar_select 0, %s10, %s8
  $region1: #{many_to_many_bid_rnn.1} parent=0
    #allocation3 [shape = 'u8[8192]{0}', space=vmem, size = 0x2000, scoped, tag = 'output window, operand 0, single buffered']
    #allocation4 [shape = 's32[1]{0}', space=sflag, size = 0x4, scoped, tag = 'scoped memory for many_to_many_bid_rnn.1']
    %12 = vsyncpa [#allocation4], 0
    // Predicated region
    $region2: #{many_to_many_bid_rnn.1} parent=1 // pred_check
      _
    $region3: #{many_to_many_bid_rnn.1} parent=1 // pred_check_branch
      %14 = sbr.rel (0) target = $region5
    $region4: #{many_to_many_bid_rnn.1} parent=1 // pred_region
      _
    $region5: #{many_to_many_bid_rnn.1} parent=1 // pred_fallthru
      _
    // Predicated region
    $region6: #{many_to_many_bid_rnn.1} parent=1 // pred_check
      _
    $region7: #{many_to_many_bid_rnn.1} parent=1 // pred_check_branch
      %16 = sbr.rel (0) target = $region9
    $region8: #{many_to_many_bid_rnn.1} parent=1 // pred_region
      _
    $region9: #{many_to_many_bid_rnn.1} parent=1 // pred_fallthru
      _
    // Predicated region
    $region10: #{many_to_many_bid_rnn.1} parent=1 // pred_check
      _
    $region11: #{many_to_many_bid_rnn.1} parent=1 // pred_check_branch
      %18 = sbr.rel (0) target = $region13
    $region12: #{many_to_many_bid_rnn.1} parent=1 // pred_region
      _
    $region13: #{many_to_many_bid_rnn.1} parent=1 // pred_fallthru
      _
    // Predicated region
    $region14: #{many_to_many_bid_rnn.1} parent=1 // pred_check
      _
    $region15: #{many_to_many_bid_rnn.1} parent=1 // pred_check_branch
      %20 = sbr.rel (0) target = $region17
    $region16: #{many_to_many_bid_rnn.1} parent=1 // pred_region
      _
    $region17: #{many_to_many_bid_rnn.1} parent=1 // pred_fallthru
      _
    // Predicated region
    $region18: #{many_to_many_bid_rnn.1} parent=1 // pred_check
      _
    $region19: #{many_to_many_bid_rnn.1} parent=1 // pred_check_branch
      %22 = sbr.rel (0) target = $region21
    $region20: #{many_to_many_bid_rnn.1} parent=1 // pred_region
      _
    $region21: #{many_to_many_bid_rnn.1} parent=1 // pred_fallthru
      _
    // Predicated region
    $region22: #{many_to_many_bid_rnn.1} parent=1 // pred_check
      _
    $region23: #{many_to_many_bid_rnn.1} parent=1 // pred_check_branch
      %24 = sbr.rel (0) target = $region25
    $region24: #{many_to_many_bid_rnn.1} parent=1 // pred_region
      _
    $region25: #{many_to_many_bid_rnn.1} parent=1 // pred_fallthru
      _
    // Predicated region
    $region26: #{many_to_many_bid_rnn.1} parent=1 // pred_check
      _
    $region27: #{many_to_many_bid_rnn.1} parent=1 // pred_check_branch
      %26 = sbr.rel (0) target = $region29
    $region28: #{many_to_many_bid_rnn.1} parent=1 // pred_region
      _
    $region29: #{many_to_many_bid_rnn.1} parent=1 // pred_fallthru
      _
    %v28 = vld [vmem:[%s4] sm:$0x1]
    %v29 = vld [vmem:[%s5] sm:$0x1]
    %v30 = vadd.f32 %v28, %v29
    %v31 = vld [vmem:[%s0] sm:$0xff]
    %v32 = vld [vmem:[%s0 + $0x8] sm:$0xff]
    %v33 = vpack.c.bf16 %v32, %v31
    %v34 = vld [vmem:[%s2] sm:$0xf]
    %v35 = vpack.c.bf16 %v34, %v34
    %v37 = vperm.slane %v30, 0
    %vm39 = vcmask 31744
    %v41 = vsel %vm39, %v33, 0
    %vm43 = vcmask 1041408
    %v45 = vsel %vm43, %v35, 0
    %47 = vmatpush.bf16.msra.mxu0 0
    %48 = vmatpush.bf16.msra.mxu0 0
    %49 = vmatpush.bf16.msra.mxu0 0
    %50 = vmatpush.bf16.msra.mxu0 0
    %51 = vmatpush.bf16.msra.mxu0 0
    %52 = vmatpush.bf16.msra.mxu0 0
    %53 = vmatpush.bf16.msra.mxu0 0
    %54 = vmatpush.bf16.msra.mxu0 %v45
    %55 = vmatmul.bf16.gmra.mxu0 %v41
    %v56 = vpop.f32.mrf.mxu0
    %v57 = vadd.f32 %v37, %v56
    %v58 = vpop.f32.mrf.mxu0
    %v59 = vadd.f32 %v37, %v58
    %60 = vdwg.mxu0
    %v61 = vld [vmem:[%s1] sm:$0xff]
    %v62 = vld [vmem:[%s1 + $0x8] sm:$0xff]
    %v63 = vld [vmem:[%s1 + $0x10] sm:$0xff]
    %v64 = vld [vmem:[%s1 + $0x18] sm:$0xff]
    %v65 = vpack.c.bf16 %v62, %v61
    %v66 = vpack.c.bf16 %v64, %v63
    %v69 = vrot.slane %v59, 7
    %vm70 = vcmask 1041409
    %v71 = vsel %vm70, %v69, %v57
    %vm73 = vcmask 261120
    %v75 = vsel %vm73, 0, 0
    %77 = vmatpush.bf16.msra.mxu0 0
    %78 = vmatpush.bf16.msra.mxu0 0
    %79 = vmatpush.bf16.msra.mxu0 0
    %80 = vmatpush.bf16.msra.mxu0 0
    %81 = vmatpush.bf16.msra.mxu0 0
    %82 = vmatpush.bf16.msra.mxu0 0
    %83 = vmatpush.bf16.msra.mxu0 %v66
    %84 = vmatpush.bf16.msra.mxu0 %v65
    %85 = vmatmul.bf16.gmra.mxu0 %v75
    %v86 = vpop.f32.mrf.mxu0
    %v87 = vadd.f32 %v71, %v86
    %v88 = vpop.f32.mrf.mxu0
    %89 = vdwg.mxu0
    %v90 = vtanh.pop %v87
    %v91 = vpack.c.bf16 %v90, %v90
    %v92 = vrot.slane %v57, 1
    %v93 = vsel %vm70, %v59, %v92
    %v96 = vsel %vm73, %v91, 0
    %98 = vmatpush.bf16.msra.mxu0 0
    %99 = vmatpush.bf16.msra.mxu0 0
    %100 = vmatpush.bf16.msra.mxu0 0
    %101 = vmatpush.bf16.msra.mxu0 0
    %102 = vmatpush.bf16.msra.mxu0 0
    %103 = vmatpush.bf16.msra.mxu0 0
    %104 = vmatpush.bf16.msra.mxu0 %v66
    %105 = vmatpush.bf16.msra.mxu0 %v65
    %106 = vmatmul.bf16.gmra.mxu0 %v96
    %v107 = vpop.f32.mrf.mxu0
    %v108 = vadd.f32 %v93, %v107
    %v109 = vpop.f32.mrf.mxu0
    %110 = vdwg.mxu0
    %v111 = vtanh.pop %v108
    %v112 = vpack.c.bf16 %v111, %v111
    %v113 = vrot.slane %v57, 2
    %v114 = vrot.slane %v59, 1
    %v115 = vsel %vm70, %v114, %v113
    %v118 = vsel %vm73, %v112, 0
    %120 = vmatpush.bf16.msra.mxu0 0
    %121 = vmatpush.bf16.msra.mxu0 0
    %122 = vmatpush.bf16.msra.mxu0 0
    %123 = vmatpush.bf16.msra.mxu0 0
    %124 = vmatpush.bf16.msra.mxu0 0
    %125 = vmatpush.bf16.msra.mxu0 0
    %126 = vmatpush.bf16.msra.mxu0 %v66
    %127 = vmatpush.bf16.msra.mxu0 %v65
    %128 = vmatmul.bf16.gmra.mxu0 %v118
    %v129 = vpop.f32.mrf.mxu0
    %v130 = vadd.f32 %v115, %v129
    %v131 = vpop.f32.mrf.mxu0
    %132 = vdwg.mxu0
    %v133 = vtanh.pop %v130
    %v134 = vpack.c.bf16 %v133, %v133
    %v135 = vrot.slane %v57, 3
    %v136 = vrot.slane %v59, 2
    %v137 = vsel %vm70, %v136, %v135
    %v140 = vsel %vm73, %v134, 0
    %142 = vmatpush.bf16.msra.mxu0 0
    %143 = vmatpush.bf16.msra.mxu0 0
    %144 = vmatpush.bf16.msra.mxu0 0
    %145 = vmatpush.bf16.msra.mxu0 0
    %146 = vmatpush.bf16.msra.mxu0 0
    %147 = vmatpush.bf16.msra.mxu0 0
    %148 = vmatpush.bf16.msra.mxu0 %v66
    %149 = vmatpush.bf16.msra.mxu0 %v65
    %150 = vmatmul.bf16.gmra.mxu0 %v140
    %v151 = vpop.f32.mrf.mxu0
    %v152 = vadd.f32 %v137, %v151
    %v153 = vpop.f32.mrf.mxu0
    %154 = vdwg.mxu0
    %v155 = vtanh.pop %v152
    %v156 = vpack.c.bf16 %v155, %v155
    %v157 = vrot.slane %v57, 4
    %v158 = vrot.slane %v59, 3
    %v159 = vsel %vm70, %v158, %v157
    %v162 = vsel %vm73, %v156, 0
    %164 = vmatpush.bf16.msra.mxu0 0
    %165 = vmatpush.bf16.msra.mxu0 0
    %166 = vmatpush.bf16.msra.mxu0 0
    %167 = vmatpush.bf16.msra.mxu0 0
    %168 = vmatpush.bf16.msra.mxu0 0
    %169 = vmatpush.bf16.msra.mxu0 0
    %170 = vmatpush.bf16.msra.mxu0 %v66
    %171 = vmatpush.bf16.msra.mxu0 %v65
    %172 = vmatmul.bf16.gmra.mxu0 %v162
    %v173 = vpop.f32.mrf.mxu0
    %v174 = vadd.f32 %v159, %v173
    %v175 = vpop.f32.mrf.mxu0
    %176 = vdwg.mxu0
    %v177 = vtanh.pop %v174
    %v178 = vpack.c.bf16 %v177, %v177
    %v179 = vrot.slane %v57, 5
    %v180 = vrot.slane %v59, 4
    %v181 = vsel %vm70, %v180, %v179
    %v184 = vsel %vm73, %v178, 0
    %186 = vmatpush.bf16.msra.mxu0 0
    %187 = vmatpush.bf16.msra.mxu0 0
    %188 = vmatpush.bf16.msra.mxu0 0
    %189 = vmatpush.bf16.msra.mxu0 0
    %190 = vmatpush.bf16.msra.mxu0 0
    %191 = vmatpush.bf16.msra.mxu0 0
    %192 = vmatpush.bf16.msra.mxu0 %v66
    %193 = vmatpush.bf16.msra.mxu0 %v65
    %194 = vmatmul.bf16.gmra.mxu0 %v184
    %v195 = vpop.f32.mrf.mxu0
    %v196 = vadd.f32 %v181, %v195
    %v197 = vpop.f32.mrf.mxu0
    %198 = vdwg.mxu0
    %v199 = vtanh.pop %v196
    %v200 = vpack.c.bf16 %v199, %v199
    %v201 = vrot.slane %v57, 6
    %v202 = vrot.slane %v59, 5
    %v203 = vsel %vm70, %v202, %v201
    %v206 = vsel %vm73, %v200, 0
    %208 = vmatpush.bf16.msra.mxu0 0
    %209 = vmatpush.bf16.msra.mxu0 0
    %210 = vmatpush.bf16.msra.mxu0 0
    %211 = vmatpush.bf16.msra.mxu0 0
    %212 = vmatpush.bf16.msra.mxu0 0
    %213 = vmatpush.bf16.msra.mxu0 0
    %214 = vmatpush.bf16.msra.mxu0 %v66
    %215 = vmatpush.bf16.msra.mxu0 %v65
    %216 = vmatmul.bf16.gmra.mxu0 %v206
    %v217 = vpop.f32.mrf.mxu0
    %v218 = vadd.f32 %v203, %v217
    %v219 = vpop.f32.mrf.mxu0
    %220 = vdwg.mxu0
    %v221 = vtanh.pop %v218
    %v222 = vpack.c.bf16 %v221, %v221
    %v223 = vrot.slane %v57, 7
    %v224 = vrot.slane %v59, 6
    %v225 = vsel %vm70, %v224, %v223
    %v228 = vsel %vm73, %v222, 0
    %230 = vmatpush.bf16.msra.mxu0 0
    %231 = vmatpush.bf16.msra.mxu0 0
    %232 = vmatpush.bf16.msra.mxu0 0
    %233 = vmatpush.bf16.msra.mxu0 0
    %234 = vmatpush.bf16.msra.mxu0 0
    %235 = vmatpush.bf16.msra.mxu0 0
    %236 = vmatpush.bf16.msra.mxu0 %v66
    %237 = vmatpush.bf16.msra.mxu0 %v65
    %238 = vmatmul.bf16.gmra.mxu0 %v228
    %v239 = vpop.f32.mrf.mxu0
    %v240 = vadd.f32 %v225, %v239
    %v241 = vpop.f32.mrf.mxu0
    %242 = vdwg.mxu0
    %v243 = vtanh.pop %v240
    %v244 = vpack.c.bf16 %v243, %v243
    %v246 = vsel %vm73, %v244, 0
    %248 = vmatpush.bf16.msra.mxu0 0
    %249 = vmatpush.bf16.msra.mxu0 0
    %250 = vmatpush.bf16.msra.mxu0 0
    %251 = vmatpush.bf16.msra.mxu0 0
    %252 = vmatpush.bf16.msra.mxu0 0
    %253 = vmatpush.bf16.msra.mxu0 0
    %254 = vmatpush.bf16.msra.mxu0 %v66
    %255 = vmatpush.bf16.msra.mxu0 %v65
    %256 = vmatmul.bf16.gmra.mxu0 %v246
    %v257 = vpop.f32.mrf.mxu0
    %v258 = vadd.f32 %v225, %v257
    %v259 = vpop.f32.mrf.mxu0
    %260 = vdwg.mxu0
    %v261 = vtanh.pop %v258
    %vm262 = vcmask 254976
    %263 = vst.msk [vmem:[#allocation2] sm:$0x3] %vm262, %v261
    %v264 = vpack.c.bf16 %v261, %v261
    %v266 = vsel %vm73, %v264, 0
    %268 = vmatpush.bf16.msra.mxu0 0
    %269 = vmatpush.bf16.msra.mxu0 0
    %270 = vmatpush.bf16.msra.mxu0 0
    %271 = vmatpush.bf16.msra.mxu0 0
    %272 = vmatpush.bf16.msra.mxu0 0
    %273 = vmatpush.bf16.msra.mxu0 0
    %274 = vmatpush.bf16.msra.mxu0 %v66
    %275 = vmatpush.bf16.msra.mxu0 %v65
    %276 = vmatmul.bf16.gmra.mxu0 %v266
    %v277 = vpop.f32.mrf.mxu0
    %v278 = vadd.f32 %v203, %v277
    %v279 = vpop.f32.mrf.mxu0
    %280 = vdwg.mxu0
    %v281 = vtanh.pop %v278
    %282 = vst.msk [vmem:[#allocation2 + $0x2] sm:$0x3] %vm262, %v281
    %v283 = vpack.c.bf16 %v281, %v281
    %v285 = vsel %vm73, %v283, 0
    %287 = vmatpush.bf16.msra.mxu0 0
    %288 = vmatpush.bf16.msra.mxu0 0
    %289 = vmatpush.bf16.msra.mxu0 0
    %290 = vmatpush.bf16.msra.mxu0 0
    %291 = vmatpush.bf16.msra.mxu0 0
    %292 = vmatpush.bf16.msra.mxu0 0
    %293 = vmatpush.bf16.msra.mxu0 %v66
    %294 = vmatpush.bf16.msra.mxu0 %v65
    %295 = vmatmul.bf16.gmra.mxu0 %v285
    %v296 = vpop.f32.mrf.mxu0
    %v297 = vadd.f32 %v181, %v296
    %v298 = vpop.f32.mrf.mxu0
    %299 = vdwg.mxu0
    %v300 = vtanh.pop %v297
    %301 = vst.msk [vmem:[#allocation2 + $0x4] sm:$0x3] %vm262, %v300
    %v302 = vpack.c.bf16 %v300, %v300
    %v304 = vsel %vm73, %v302, 0
    %306 = vmatpush.bf16.msra.mxu0 0
    %307 = vmatpush.bf16.msra.mxu0 0
    %308 = vmatpush.bf16.msra.mxu0 0
    %309 = vmatpush.bf16.msra.mxu0 0
    %310 = vmatpush.bf16.msra.mxu0 0
    %311 = vmatpush.bf16.msra.mxu0 0
    %312 = vmatpush.bf16.msra.mxu0 %v66
    %313 = vmatpush.bf16.msra.mxu0 %v65
    %314 = vmatmul.bf16.gmra.mxu0 %v304
    %v315 = vpop.f32.mrf.mxu0
    %v316 = vadd.f32 %v159, %v315
    %v317 = vpop.f32.mrf.mxu0
    %318 = vdwg.mxu0
    %v319 = vtanh.pop %v316
    %320 = vst.msk [vmem:[#allocation2 + $0x6] sm:$0x3] %vm262, %v319
    %v321 = vpack.c.bf16 %v319, %v319
    %v323 = vsel %vm73, %v321, 0
    %325 = vmatpush.bf16.msra.mxu0 0
    %326 = vmatpush.bf16.msra.mxu0 0
    %327 = vmatpush.bf16.msra.mxu0 0
    %328 = vmatpush.bf16.msra.mxu0 0
    %329 = vmatpush.bf16.msra.mxu0 0
    %330 = vmatpush.bf16.msra.mxu0 0
    %331 = vmatpush.bf16.msra.mxu0 %v66
    %332 = vmatpush.bf16.msra.mxu0 %v65
    %333 = vmatmul.bf16.gmra.mxu0 %v323
    %v334 = vpop.f32.mrf.mxu0
    %v335 = vadd.f32 %v137, %v334
    %v336 = vpop.f32.mrf.mxu0
    %337 = vdwg.mxu0
    %v338 = vtanh.pop %v335
    %339 = vst.msk [vmem:[#allocation2 + $0x8] sm:$0x3] %vm262, %v338
    %v340 = vpack.c.bf16 %v338, %v338
    %v342 = vsel %vm73, %v340, 0
    %344 = vmatpush.bf16.msra.mxu0 0
    %345 = vmatpush.bf16.msra.mxu0 0
    %346 = vmatpush.bf16.msra.mxu0 0
    %347 = vmatpush.bf16.msra.mxu0 0
    %348 = vmatpush.bf16.msra.mxu0 0
    %349 = vmatpush.bf16.msra.mxu0 0
    %350 = vmatpush.bf16.msra.mxu0 %v66
    %351 = vmatpush.bf16.msra.mxu0 %v65
    %352 = vmatmul.bf16.gmra.mxu0 %v342
    %v353 = vpop.f32.mrf.mxu0
    %v354 = vadd.f32 %v115, %v353
    %v355 = vpop.f32.mrf.mxu0
    %356 = vdwg.mxu0
    %v357 = vtanh.pop %v354
    %358 = vst.msk [vmem:[#allocation2 + $0xa] sm:$0x3] %vm262, %v357
    %v359 = vpack.c.bf16 %v357, %v357
    %v361 = vsel %vm73, %v359, 0
    %363 = vmatpush.bf16.msra.mxu0 0
    %364 = vmatpush.bf16.msra.mxu0 0
    %365 = vmatpush.bf16.msra.mxu0 0
    %366 = vmatpush.bf16.msra.mxu0 0
    %367 = vmatpush.bf16.msra.mxu0 0
    %368 = vmatpush.bf16.msra.mxu0 0
    %369 = vmatpush.bf16.msra.mxu0 %v66
    %370 = vmatpush.bf16.msra.mxu0 %v65
    %371 = vmatmul.bf16.gmra.mxu0 %v361
    %v372 = vpop.f32.mrf.mxu0
    %v373 = vadd.f32 %v93, %v372
    %v374 = vpop.f32.mrf.mxu0
    %375 = vdwg.mxu0
    %v376 = vtanh.pop %v373
    %377 = vst.msk [vmem:[#allocation2 + $0xc] sm:$0x3] %vm262, %v376
    %v378 = vpack.c.bf16 %v376, %v376
    %v380 = vsel %vm73, %v378, 0
    %382 = vmatpush.bf16.msra.mxu0 0
    %383 = vmatpush.bf16.msra.mxu0 0
    %384 = vmatpush.bf16.msra.mxu0 0
    %385 = vmatpush.bf16.msra.mxu0 0
    %386 = vmatpush.bf16.msra.mxu0 0
    %387 = vmatpush.bf16.msra.mxu0 0
    %388 = vmatpush.bf16.msra.mxu0 %v66
    %389 = vmatpush.bf16.msra.mxu0 %v65
    %390 = vmatmul.bf16.gmra.mxu0 %v380
    %v391 = vpop.f32.mrf.mxu0
    %v392 = vadd.f32 %v71, %v391
    %v393 = vpop.f32.mrf.mxu0
    %394 = vdwg.mxu0
    %v395 = vtanh.pop %v392
    %396 = vst.msk [vmem:[#allocation2 + $0xe] sm:$0x3] %vm262, %v395
    %v397 = vld [vmem:[#allocation2] sm:$0xff]
    %v398 = vld [vmem:[#allocation2 + $0x8] sm:$0xff]
    %v399 = vpack.c.bf16 %v398, %v397
    %v400 = vld [vmem:[%s3] sm:$0xff]
    %v401 = vld [vmem:[%s3 + $0x8] sm:$0xff]
    %v402 = vld [vmem:[%s3 + $0x10] sm:$0xff]
    %v403 = vld [vmem:[%s3 + $0x18] sm:$0xff]
    %v404 = vpack.c.bf16 %v401, %v400
    %v405 = vpack.c.bf16 %v403, %v402
    %v406 = vld [vmem:[%s6] sm:$0x1]
    %v408 = vperm.slane %v406, 0
    %v411 = vsel %vm73, %v399, 0
    %413 = vmatpush.bf16.msra.mxu0 0
    %414 = vmatpush.bf16.msra.mxu0 0
    %415 = vmatpush.bf16.msra.mxu0 0
    %416 = vmatpush.bf16.msra.mxu0 0
    %417 = vmatpush.bf16.msra.mxu0 0
    %418 = vmatpush.bf16.msra.mxu0 0
    %419 = vmatpush.bf16.msra.mxu0 %v405
    %420 = vmatpush.bf16.msra.mxu0 %v404
    %421 = vmatmul.bf16.gmra.mxu0 %v411
    %v422 = vpop.f32.mrf.mxu0
    %v423 = vadd.f32 %v408, %v422
    %v424 = vpop.f32.mrf.mxu0
    %v425 = vadd.f32 %v408, %v424
    %426 = vdwg.mxu0
    %v427 = vtanh.pop %v423
    %v428 = vtanh.pop %v425
    %vm429 = vcmask 64512
    %430 = vst.msk [vmem:[#allocation3] sm:$0xff] %vm429, %v427
    %431 = vst.msk [vmem:[#allocation3 + $0x8] sm:$0xff] %vm429, %v428
    // Predicated region
    $region30: #{many_to_many_bid_rnn.1} parent=1 // pred_check
      _
    $region31: #{many_to_many_bid_rnn.1} parent=1 // pred_check_branch
      %433 = sbr.rel (0) target = $region33
    $region32: #{many_to_many_bid_rnn.1} parent=1 // pred_region
      %435 = vsyncadd [#allocation4], 0
      %s436 = sshll.u32 [#allocation3], 4
      %s437 = int_to_ptr.vmem [resolvable:$true] %s436
      %s438 = sshll.u32 %s7, 4
      %s439 = int_to_ptr.hbm [resolvable:$true] %s438
      %444 = dma.vmem_to_hbm [thread:$0]  %s437, 256, %s439, [#allocation4], 128, 128, 8
    $region33: #{many_to_many_bid_rnn.1} parent=1 // pred_fallthru
      _
    // Predicated region
    $region34: #{many_to_many_bid_rnn.1} parent=1 // pred_check
      _
    $region35: #{many_to_many_bid_rnn.1} parent=1 // pred_check_branch
      %446 = sbr.rel (0) target = $region37
    $region36: #{many_to_many_bid_rnn.1} parent=1 // pred_region
      %448 = dma.done [#allocation4], 256
    $region37: #{many_to_many_bid_rnn.1} parent=1 // pred_fallthru
      _
    %449 = vsyncpa [#allocation4], 1

</llo_original>
